<compile_context>
chip_gen: v5e
topology: v5e:2x2
jax: 0.10.0
libtpu: 0.0.40
codegen_flags: <defaults>
</compile_context>

<pallas_src>
import functools

import jax
import jax.numpy as jnp
from jax.experimental import pallas as pl
from jax.experimental.pallas import tpu as pltpu


def _encoding_block_kernel(x_ref, t_ref,
                           w1_ref, b1_ref,
                           wt_ref, bt_ref,
                           w2_ref, b2_ref,
                           o_ref):
    # layer1: relu(x @ W1 + b1)
    h = jnp.dot(x_ref[...], w1_ref[...], preferred_element_type=jnp.float32)
    h = jnp.maximum(h + b1_ref[...], 0.0)          # (1, N) bias broadcasts

    # temb_proj: relu(t @ Wt + bt), accumulated into h
    temb = jnp.dot(t_ref[...], wt_ref[...], preferred_element_type=jnp.float32)
    h = h + jnp.maximum(temb + bt_ref[...], 0.0)

    # layer2: relu(h @ W2 + b2)
    out = jnp.dot(h, w2_ref[...], preferred_element_type=jnp.float32)
    o_ref[...] = jnp.maximum(out + b2_ref[...], 0.0).astype(o_ref.dtype)


def _round_up(n, m):
    return (n + m - 1) // m * m


def _pad2(a, rows, cols):
    pr, pc = rows - a.shape[0], cols - a.shape[1]
    if pr == 0 and pc == 0:
        return a
    return jnp.pad(a, ((0, pr), (0, pc)))


@functools.partial(jax.jit, static_argnames=("tile_b",))
def encoding_block(x, t, params, *, tile_b=512):
    """x: (B, dim_in); t: (B, tdim) -> (out, skip), both (B, dim_out)."""
    w1, b1, wt, bt, w2, b2 = params
    B, dim_in = x.shape
    tdim = t.shape[1]
    dim_out = w1.shape[1]

    # Pad feature dims to 128 lanes (lane-dense loads/stores, full MXU tiles)
    # and batch to a multiple of the batch tile (itself a multiple of 8).
    dim_in_p = _round_up(dim_in, 128)
    tdim_p = _round_up(tdim, 128)
    dim_out_p = _round_up(dim_out, 128)

    tb = _round_up(min(tile_b, _round_up(B, 8)), 8)
    B_p = _round_up(B, tb)
    grid = (B_p // tb,)

    x_p = _pad2(x.astype(jnp.float32), B_p, dim_in_p)
    t_p = _pad2(t.astype(jnp.float32), B_p, tdim_p)
    w1_p = _pad2(w1, dim_in_p, dim_out_p)
    b1_p = _pad2(b1, 1, dim_out_p)
    wt_p = _pad2(wt, tdim_p, dim_out_p)
    bt_p = _pad2(bt, 1, dim_out_p)
    w2_p = _pad2(w2, dim_out_p, dim_out_p)
    b2_p = _pad2(b2, 1, dim_out_p)

    # Batch-tiled activations; weights/biases resident (constant index_map).
    def act_spec(cols):
        return pl.BlockSpec((tb, cols), lambda i: (i, 0))

    def resident_spec(rows, cols):
        return pl.BlockSpec((rows, cols), lambda i: (0, 0))

    flops = 2 * B_p * (dim_in_p + tdim_p + dim_out_p) * dim_out_p
    bytes_accessed = 4 * (
        B_p * (dim_in_p + tdim_p + dim_out_p)            # activations in/out
        + dim_in_p * dim_out_p + tdim_p * dim_out_p      # W1, Wt
        + dim_out_p * dim_out_p + 3 * dim_out_p          # W2, biases
    )

    out_p = pl.pallas_call(
        _encoding_block_kernel,
        out_shape=jax.ShapeDtypeStruct((B_p, dim_out_p), jnp.float32),
        grid_spec=pltpu.PrefetchScalarGridSpec(
            num_scalar_prefetch=0,
            grid=grid,
            in_specs=[
                act_spec(dim_in_p),                   # x tile
                act_spec(tdim_p),                     # t tile
                resident_spec(dim_in_p, dim_out_p),   # W1
                resident_spec(1, dim_out_p),          # b1
                resident_spec(tdim_p, dim_out_p),     # Wt
                resident_spec(1, dim_out_p),          # bt
                resident_spec(dim_out_p, dim_out_p),  # W2
                resident_spec(1, dim_out_p),          # b2
            ],
            out_specs=pl.BlockSpec((tb, dim_out_p), lambda i: (i, 0)),
        ),
        compiler_params=pltpu.CompilerParams(
            dimension_semantics=("parallel",),        # megacore sharding
            vmem_limit_bytes=32 * 1024 * 1024,        # fits v7x's 64 MiB VMEM
        ),
        cost_estimate=pl.CostEstimate(
            flops=flops, transcendentals=0, bytes_accessed=bytes_accessed),
    )(x_p, t_p, w1_p, b1_p, wt_p, bt_p, w2_p, b2_p)

    out = out_p[:B, :dim_out]
    return out, out                                   # (x, skip_connection)


def init_params(key, dim_in, dim_out, tdim):
    """Deterministic synthetic parameters (not a checkpoint load).

    Weights stored as (in_features, out_features)."""
    ks = jax.random.split(key, 6)
    s1 = 1.0 / jnp.sqrt(1.0 * dim_in)
    st = 1.0 / jnp.sqrt(1.0 * tdim)
    s2 = 1.0 / jnp.sqrt(1.0 * dim_out)
    w1 = jax.random.uniform(ks[0], (dim_in, dim_out), jnp.float32, -s1, s1)
    b1 = jax.random.uniform(ks[1], (1, dim_out), jnp.float32, -s1, s1)
    wt = jax.random.uniform(ks[2], (tdim, dim_out), jnp.float32, -st, st)
    bt = jax.random.uniform(ks[3], (1, dim_out), jnp.float32, -st, st)
    w2 = jax.random.uniform(ks[4], (dim_out, dim_out), jnp.float32, -s2, s2)
    b2 = jax.random.uniform(ks[5], (1, dim_out), jnp.float32, -s2, s2)
    return (w1, b1, wt, bt, w2, b2)


def reference(x, t, params):
    w1, b1, wt, bt, w2, b2 = params
    h = jnp.maximum(x @ w1 + b1, 0.0)
    h = h + jnp.maximum(t @ wt + bt, 0.0)
    out = jnp.maximum(h @ w2 + b2, 0.0)
    return out, out


if __name__ == "__main__":
    B, dim_in, dim_out, tdim = 256, 32, 16, 24

    key = jax.random.PRNGKey(0)
    k_x, k_t, k_p = jax.random.split(key, 3)
    x = jax.random.normal(k_x, (B, dim_in), jnp.float32)
    t = jax.random.normal(k_t, (B, tdim), jnp.float32)
    params = init_params(k_p, dim_in, dim_out, tdim)

    # tile_b=64 -> grid=(4,), exercises the batch-tiled double-buffered path.
    out, skip = encoding_block(x, t, params, tile_b=64)
    jax.block_until_ready(out)

    ref_out, ref_skip = reference(x, t, params)
    assert out.shape == (B, dim_out) and skip.shape == (B, dim_out)
    assert jnp.allclose(out, ref_out, atol=1e-5, rtol=1e-5)
    assert jnp.allclose(skip, ref_skip, atol=1e-5, rtol=1e-5)

    # Also exercise the single-tile path (tb clamped to the whole batch).
    out1, _ = encoding_block(x, t, params)
    jax.block_until_ready(out1)
    assert jnp.allclose(out1, ref_out, atol=1e-5, rtol=1e-5)

    print("KERNEL_OK")
</pallas_src>

<mosaic_0001>
module attributes {stable_mosaic.version = 11 : i64} {
  func.func @_encoding_block_kernel(%arg0: i32, %arg1: memref<64x128xf32, #tpu.memory_space<vmem>>, %arg2: memref<64x128xf32, #tpu.memory_space<vmem>>, %arg3: memref<128x128xf32, #tpu.memory_space<vmem>>, %arg4: memref<1x128xf32, #tpu.memory_space<vmem>>, %arg5: memref<128x128xf32, #tpu.memory_space<vmem>>, %arg6: memref<1x128xf32, #tpu.memory_space<vmem>>, %arg7: memref<128x128xf32, #tpu.memory_space<vmem>>, %arg8: memref<1x128xf32, #tpu.memory_space<vmem>>, %arg9: memref<64x128xf32, #tpu.memory_space<vmem>>) attributes {dimension_semantics = [#tpu.dimension_semantics<parallel>], iteration_bounds = array<i64: 4>, scalar_prefetch = 0 : i64, scratch_operands = 0 : i64, tpu.core_type = #tpu.core_type<tc>, window_params = [{transform_indices = @transform_0, window_bounds = array<i64: 64, 128>}, {transform_indices = @transform_1, window_bounds = array<i64: 64, 128>}, {pipeline_mode = #tpu.pipeline_mode<synchronous>, transform_indices = @transform_2, window_bounds = array<i64: 128, 128>}, {pipeline_mode = #tpu.pipeline_mode<synchronous>, transform_indices = @transform_3, window_bounds = array<i64: 1, 128>}, {pipeline_mode = #tpu.pipeline_mode<synchronous>, transform_indices = @transform_4, window_bounds = array<i64: 128, 128>}, {pipeline_mode = #tpu.pipeline_mode<synchronous>, transform_indices = @transform_5, window_bounds = array<i64: 1, 128>}, {pipeline_mode = #tpu.pipeline_mode<synchronous>, transform_indices = @transform_6, window_bounds = array<i64: 128, 128>}, {pipeline_mode = #tpu.pipeline_mode<synchronous>, transform_indices = @transform_7, window_bounds = array<i64: 1, 128>}, {transform_indices = @transform_8, window_bounds = array<i64: 64, 128>}]} {
    %c0 = arith.constant 0 : index
    %c0_0 = arith.constant 0 : index
    %0 = vector.load %arg1[%c0, %c0_0] : memref<64x128xf32, #tpu.memory_space<vmem>>, vector<64x128xf32>
    %c0_1 = arith.constant 0 : index
    %c0_2 = arith.constant 0 : index
    %1 = vector.load %arg3[%c0_1, %c0_2] : memref<128x128xf32, #tpu.memory_space<vmem>>, vector<128x128xf32>
    %cst = arith.constant dense<0.000000e+00> : vector<64x128xf32>
    %2 = tpu.matmul %0, %1, %cst {dimension_numbers = #tpu.dot_dimension_numbers<[1], [0], [0], [1], [0, 0, 1, 1], [], []>} : vector<64x128xf32>, vector<128x128xf32>, vector<64x128xf32> -> vector<64x128xf32>
    %c0_3 = arith.constant 0 : index
    %c0_4 = arith.constant 0 : index
    %3 = vector.load %arg4[%c0_3, %c0_4] : memref<1x128xf32, #tpu.memory_space<vmem>>, vector<1x128xf32>
    %4 = vector.broadcast %3 : vector<1x128xf32> to vector<64x128xf32>
    %5 = arith.addf %2, %4 : vector<64x128xf32>
    %cst_5 = arith.constant 0.000000e+00 : f32
    %6 = vector.broadcast %cst_5 : f32 to vector<64x128xf32>
    %7 = arith.maximumf %5, %6 : vector<64x128xf32>
    %c0_6 = arith.constant 0 : index
    %c0_7 = arith.constant 0 : index
    %8 = vector.load %arg2[%c0_6, %c0_7] : memref<64x128xf32, #tpu.memory_space<vmem>>, vector<64x128xf32>
    %c0_8 = arith.constant 0 : index
    %c0_9 = arith.constant 0 : index
    %9 = vector.load %arg5[%c0_8, %c0_9] : memref<128x128xf32, #tpu.memory_space<vmem>>, vector<128x128xf32>
    %cst_10 = arith.constant dense<0.000000e+00> : vector<64x128xf32>
    %10 = tpu.matmul %8, %9, %cst_10 {dimension_numbers = #tpu.dot_dimension_numbers<[1], [0], [0], [1], [0, 0, 1, 1], [], []>} : vector<64x128xf32>, vector<128x128xf32>, vector<64x128xf32> -> vector<64x128xf32>
    %c0_11 = arith.constant 0 : index
    %c0_12 = arith.constant 0 : index
    %11 = vector.load %arg6[%c0_11, %c0_12] : memref<1x128xf32, #tpu.memory_space<vmem>>, vector<1x128xf32>
    %12 = vector.broadcast %11 : vector<1x128xf32> to vector<64x128xf32>
    %13 = arith.addf %10, %12 : vector<64x128xf32>
    %cst_13 = arith.constant 0.000000e+00 : f32
    %14 = vector.broadcast %cst_13 : f32 to vector<64x128xf32>
    %15 = arith.maximumf %13, %14 : vector<64x128xf32>
    %16 = arith.addf %7, %15 : vector<64x128xf32>
    %c0_14 = arith.constant 0 : index
    %c0_15 = arith.constant 0 : index
    %17 = vector.load %arg7[%c0_14, %c0_15] : memref<128x128xf32, #tpu.memory_space<vmem>>, vector<128x128xf32>
    %cst_16 = arith.constant dense<0.000000e+00> : vector<64x128xf32>
    %18 = tpu.matmul %16, %17, %cst_16 {dimension_numbers = #tpu.dot_dimension_numbers<[1], [0], [0], [1], [0, 0, 1, 1], [], []>} : vector<64x128xf32>, vector<128x128xf32>, vector<64x128xf32> -> vector<64x128xf32>
    %c0_17 = arith.constant 0 : index
    %c0_18 = arith.constant 0 : index
    %19 = vector.load %arg8[%c0_17, %c0_18] : memref<1x128xf32, #tpu.memory_space<vmem>>, vector<1x128xf32>
    %20 = vector.broadcast %19 : vector<1x128xf32> to vector<64x128xf32>
    %21 = arith.addf %18, %20 : vector<64x128xf32>
    %cst_19 = arith.constant 0.000000e+00 : f32
    %22 = vector.broadcast %cst_19 : f32 to vector<64x128xf32>
    %23 = arith.maximumf %21, %22 : vector<64x128xf32>
    %c0_20 = arith.constant 0 : index
    %c0_21 = arith.constant 0 : index
    %24 = vector.load %arg9[%c0_20, %c0_21] : memref<64x128xf32, #tpu.memory_space<vmem>>, vector<64x128xf32>
    tpu.vector_store %arg9[%c0_20, %c0_21], %23 {strides = array<i32>} : memref<64x128xf32, #tpu.memory_space<vmem>>, vector<64x128xf32>,
    return
  }
  func.func @transform_0(%arg0: i32) -> (i32, i32) {
    %c0_i32 = arith.constant 0 : i32
    %c0_i32_0 = arith.constant 0 : i32
    return %arg0, %c0_i32 : i32, i32
  }
  func.func @transform_1(%arg0: i32) -> (i32, i32) {
    %c0_i32 = arith.constant 0 : i32
    %c0_i32_0 = arith.constant 0 : i32
    return %arg0, %c0_i32 : i32, i32
  }
  func.func @transform_2(%arg0: i32) -> (i32, i32) {
    %c0_i32 = arith.constant 0 : i32
    %c0_i32_0 = arith.constant 0 : i32
    %c0_i32_1 = arith.constant 0 : i32
    return %c0_i32, %c0_i32_0 : i32, i32
  }
  func.func @transform_3(%arg0: i32) -> (i32, i32) {
    %c0_i32 = arith.constant 0 : i32
    %c0_i32_0 = arith.constant 0 : i32
    %c0_i32_1 = arith.constant 0 : i32
    return %c0_i32, %c0_i32_0 : i32, i32
  }
  func.func @transform_4(%arg0: i32) -> (i32, i32) {
    %c0_i32 = arith.constant 0 : i32
    %c0_i32_0 = arith.constant 0 : i32
    %c0_i32_1 = arith.constant 0 : i32
    return %c0_i32, %c0_i32_0 : i32, i32
  }
  func.func @transform_5(%arg0: i32) -> (i32, i32) {
    %c0_i32 = arith.constant 0 : i32
    %c0_i32_0 = arith.constant 0 : i32
    %c0_i32_1 = arith.constant 0 : i32
    return %c0_i32, %c0_i32_0 : i32, i32
  }
  func.func @transform_6(%arg0: i32) -> (i32, i32) {
    %c0_i32 = arith.constant 0 : i32
    %c0_i32_0 = arith.constant 0 : i32
    %c0_i32_1 = arith.constant 0 : i32
    return %c0_i32, %c0_i32_0 : i32, i32
  }
  func.func @transform_7(%arg0: i32) -> (i32, i32) {
    %c0_i32 = arith.constant 0 : i32
    %c0_i32_0 = arith.constant 0 : i32
    %c0_i32_1 = arith.constant 0 : i32
    return %c0_i32, %c0_i32_0 : i32, i32
  }
  func.func @transform_8(%arg0: i32) -> (i32, i32) {
    %c0_i32 = arith.constant 0 : i32
    %c0_i32_0 = arith.constant 0 : i32
    return %arg0, %c0_i32 : i32, i32
  }
}

</mosaic_0001>

<llo_original>
// kernel: encoding_block.1
$region0: #{encoding_block.1}
  #allocation0 [shape = 'u32[]', space=smem, size = 0x4, offset = 0x4, fixed_abs, tag = 'smem constant byte address 0x4 - core index']
  #allocation1 [shape = 'u32[72,128]{1,0:T(1,128)}', space=vmem, size = 0x9000, scoped, tag = 'internal scratch']
  %s0 = inlined_call_operand.vmem [shape: f32[256,128], index: 0, kind: input, shape index: {}]
  %s1 = inlined_call_operand.vmem [shape: f32[256,128], index: 1, kind: input, shape index: {}]
  %s2 = inlined_call_operand.vmem [shape: f32[128,128], index: 2, kind: input, shape index: {}]
  %s3 = inlined_call_operand.vmem [shape: f32[1,128], index: 3, kind: input, shape index: {}]
  %s4 = inlined_call_operand.vmem [shape: f32[128,128], index: 4, kind: input, shape index: {}]
  %s5 = inlined_call_operand.vmem [shape: f32[1,128], index: 5, kind: input, shape index: {}]
  %s6 = inlined_call_operand.vmem [shape: f32[128,128], index: 6, kind: input, shape index: {}]
  %s7 = inlined_call_operand.vmem [shape: f32[1,128], index: 7, kind: input, shape index: {}]
  %s8 = inlined_call_operand.vmem [shape: f32[256,128], index: 8, kind: output, shape index: {}]
  %s9 = sld [smem:[#allocation0]]
  $region65: #{encoding_block.1} parent=0
    _
  %s11 = ssub.s32 1, %s9
  %s12 = scalar_select 0, %s11, %s9
  loop: start=0, step=1, limit=6
  $region2: #{encoding_block.1} parent=0 // loop_pre_header
    _
  $region3: #{encoding_block.1} parent=0 // loop_header
    %s14 = sphi 0, %s18
    %p15 = scmp.ge.s32.totalorder %s14, 6
    %s24 = sphi 0, %s26
    %s27 = sphi 0, %s24
    %s28 = sphi 0, %s27
    %s44 = sphi 0, %s28
    %s50 = sphi 0, %s52
    %s53 = sphi 0, %s50
    %s54 = sphi 0, %s53
    %s70 = sphi 0, %s54
    %s74 = sphi 0, %s74
    %s76 = sphi 0, %s74
    %s77 = sphi 0, %s76
    %s91 = sphi 0, %s77
    %s95 = sphi 0, %s95
    %s97 = sphi 0, %s95
    %s98 = sphi 0, %s97
    %s112 = sphi 0, %s98
    %s116 = sphi 0, %s116
    %s118 = sphi 0, %s116
    %s119 = sphi 0, %s118
    %s133 = sphi 0, %s119
    %s137 = sphi 0, %s137
    %s139 = sphi 0, %s137
    %s140 = sphi 0, %s139
    %s154 = sphi 0, %s140
    %s158 = sphi 0, %s158
    %s160 = sphi 0, %s158
    %s161 = sphi 0, %s160
    %s175 = sphi 0, %s161
    %s179 = sphi 0, %s179
    %s181 = sphi 0, %s179
    %s182 = sphi 0, %s181
    %s196 = sphi 0, %s182
    %s202 = sphi 0, %s204
    %s205 = sphi 0, %s202
    %s206 = sphi 0, %s205
    %s222 = sphi 0, %s206
  $region4: #{encoding_block.1} parent=0 // loop_header_branch
    %17 = sbr.rel (%p15) target = $region8
  $region5: #{encoding_block.1} parent=0 // loop_body
    %s19 = ssub.s32 %s14, 1
    %s20 = ssub.s32 %s14, 2
    %s21 = sadd.s32 %s14, 1
    %s22 = ssub.s32 %s14, %s21
    %p23 = scmp.eq.s32.totalorder %s22, 0
    %s25 = sadd.s32 %s24, 1
    %s26 = scalar_select %p23, %s24, %s25
    %p29 = pneg %p23
    %p30 = scmp.eq.s32.totalorder %s14, 3
    %p31 = por %p29, %p30
    %p32 = scmp.ne.s32.totalorder %s24, %s27
    %p33 = scmp.eq.s32.totalorder %s14, 0
    %p34 = por %p32, %p33
    %p35 = scmp.ne.s32.totalorder %s24, %s27
    %p36 = scmp.eq.s32.totalorder %s19, 3
    %p37 = por %p35, %p36
    %p38 = scmp.ne.s32.totalorder %s27, %s28
    %p39 = scmp.eq.s32.totalorder %s19, 0
    %p40 = por %p38, %p39
    %p41 = scmp.ne.s32.totalorder %s27, %s28
    %p42 = scmp.eq.s32.totalorder %s20, 3
    %p43 = por %p41, %p42
    %p45 = scmp.ne.s32.totalorder %s28, %s44
    %p46 = scmp.eq.s32.totalorder %s20, 0
    %p47 = por %p45, %p46
    %s48 = ssub.s32 %s14, %s21
    %p49 = scmp.eq.s32.totalorder %s48, 0
    %s51 = sadd.s32 %s50, 1
    %s52 = scalar_select %p49, %s50, %s51
    %p55 = pneg %p49
    %p56 = scmp.eq.s32.totalorder %s14, 3
    %p57 = por %p55, %p56
    %p58 = scmp.ne.s32.totalorder %s50, %s53
    %p59 = scmp.eq.s32.totalorder %s14, 0
    %p60 = por %p58, %p59
    %p61 = scmp.ne.s32.totalorder %s50, %s53
    %p62 = scmp.eq.s32.totalorder %s19, 3
    %p63 = por %p61, %p62
    %p64 = scmp.ne.s32.totalorder %s53, %s54
    %p65 = scmp.eq.s32.totalorder %s19, 0
    %p66 = por %p64, %p65
    %p67 = scmp.ne.s32.totalorder %s53, %s54
    %p68 = scmp.eq.s32.totalorder %s20, 3
    %p69 = por %p67, %p68
    %p71 = scmp.ne.s32.totalorder %s54, %s70
    %p72 = scmp.eq.s32.totalorder %s20, 0
    %p73 = por %p71, %p72
    %s75 = sadd.s32 %s74, 1
    %p78 = scmp.eq.s32.totalorder %s14, 3
    %p79 = scmp.ne.s32.totalorder %s74, %s76
    %p80 = scmp.eq.s32.totalorder %s14, 0
    %p81 = por %p79, %p80
    %p82 = scmp.ne.s32.totalorder %s74, %s76
    %p83 = scmp.eq.s32.totalorder %s19, 3
    %p84 = por %p82, %p83
    %p85 = scmp.ne.s32.totalorder %s76, %s77
    %p86 = scmp.eq.s32.totalorder %s19, 0
    %p87 = por %p85, %p86
    %p88 = scmp.ne.s32.totalorder %s76, %s77
    %p89 = scmp.eq.s32.totalorder %s20, 3
    %p90 = por %p88, %p89
    %p92 = scmp.ne.s32.totalorder %s77, %s91
    %p93 = scmp.eq.s32.totalorder %s20, 0
    %p94 = por %p92, %p93
    %s96 = sadd.s32 %s95, 1
    %p99 = scmp.eq.s32.totalorder %s14, 3
    %p100 = scmp.ne.s32.totalorder %s95, %s97
    %p101 = scmp.eq.s32.totalorder %s14, 0
    %p102 = por %p100, %p101
    %p103 = scmp.ne.s32.totalorder %s95, %s97
    %p104 = scmp.eq.s32.totalorder %s19, 3
    %p105 = por %p103, %p104
    %p106 = scmp.ne.s32.totalorder %s97, %s98
    %p107 = scmp.eq.s32.totalorder %s19, 0
    %p108 = por %p106, %p107
    %p109 = scmp.ne.s32.totalorder %s97, %s98
    %p110 = scmp.eq.s32.totalorder %s20, 3
    %p111 = por %p109, %p110
    %p113 = scmp.ne.s32.totalorder %s98, %s112
    %p114 = scmp.eq.s32.totalorder %s20, 0
    %p115 = por %p113, %p114
    %s117 = sadd.s32 %s116, 1
    %p120 = scmp.eq.s32.totalorder %s14, 3
    %p121 = scmp.ne.s32.totalorder %s116, %s118
    %p122 = scmp.eq.s32.totalorder %s14, 0
    %p123 = por %p121, %p122
    %p124 = scmp.ne.s32.totalorder %s116, %s118
    %p125 = scmp.eq.s32.totalorder %s19, 3
    %p126 = por %p124, %p125
    %p127 = scmp.ne.s32.totalorder %s118, %s119
    %p128 = scmp.eq.s32.totalorder %s19, 0
    %p129 = por %p127, %p128
    %p130 = scmp.ne.s32.totalorder %s118, %s119
    %p131 = scmp.eq.s32.totalorder %s20, 3
    %p132 = por %p130, %p131
    %p134 = scmp.ne.s32.totalorder %s119, %s133
    %p135 = scmp.eq.s32.totalorder %s20, 0
    %p136 = por %p134, %p135
    %s138 = sadd.s32 %s137, 1
    %p141 = scmp.eq.s32.totalorder %s14, 3
    %p142 = scmp.ne.s32.totalorder %s137, %s139
    %p143 = scmp.eq.s32.totalorder %s14, 0
    %p144 = por %p142, %p143
    %p145 = scmp.ne.s32.totalorder %s137, %s139
    %p146 = scmp.eq.s32.totalorder %s19, 3
    %p147 = por %p145, %p146
    %p148 = scmp.ne.s32.totalorder %s139, %s140
    %p149 = scmp.eq.s32.totalorder %s19, 0
    %p150 = por %p148, %p149
    %p151 = scmp.ne.s32.totalorder %s139, %s140
    %p152 = scmp.eq.s32.totalorder %s20, 3
    %p153 = por %p151, %p152
    %p155 = scmp.ne.s32.totalorder %s140, %s154
    %p156 = scmp.eq.s32.totalorder %s20, 0
    %p157 = por %p155, %p156
    %s159 = sadd.s32 %s158, 1
    %p162 = scmp.eq.s32.totalorder %s14, 3
    %p163 = scmp.ne.s32.totalorder %s158, %s160
    %p164 = scmp.eq.s32.totalorder %s14, 0
    %p165 = por %p163, %p164
    %p166 = scmp.ne.s32.totalorder %s158, %s160
    %p167 = scmp.eq.s32.totalorder %s19, 3
    %p168 = por %p166, %p167
    %p169 = scmp.ne.s32.totalorder %s160, %s161
    %p170 = scmp.eq.s32.totalorder %s19, 0
    %p171 = por %p169, %p170
    %p172 = scmp.ne.s32.totalorder %s160, %s161
    %p173 = scmp.eq.s32.totalorder %s20, 3
    %p174 = por %p172, %p173
    %p176 = scmp.ne.s32.totalorder %s161, %s175
    %p177 = scmp.eq.s32.totalorder %s20, 0
    %p178 = por %p176, %p177
    %s180 = sadd.s32 %s179, 1
    %p183 = scmp.eq.s32.totalorder %s14, 3
    %p184 = scmp.ne.s32.totalorder %s179, %s181
    %p185 = scmp.eq.s32.totalorder %s14, 0
    %p186 = por %p184, %p185
    %p187 = scmp.ne.s32.totalorder %s179, %s181
    %p188 = scmp.eq.s32.totalorder %s19, 3
    %p189 = por %p187, %p188
    %p190 = scmp.ne.s32.totalorder %s181, %s182
    %p191 = scmp.eq.s32.totalorder %s19, 0
    %p192 = por %p190, %p191
    %p193 = scmp.ne.s32.totalorder %s181, %s182
    %p194 = scmp.eq.s32.totalorder %s20, 3
    %p195 = por %p193, %p194
    %p197 = scmp.ne.s32.totalorder %s182, %s196
    %p198 = scmp.eq.s32.totalorder %s20, 0
    %p199 = por %p197, %p198
    %s200 = ssub.s32 %s14, %s21
    %p201 = scmp.eq.s32.totalorder %s200, 0
    %s203 = sadd.s32 %s202, 1
    %s204 = scalar_select %p201, %s202, %s203
    %p207 = pneg %p201
    %p208 = scmp.eq.s32.totalorder %s14, 3
    %p209 = por %p207, %p208
    %p210 = scmp.ne.s32.totalorder %s202, %s205
    %p211 = scmp.eq.s32.totalorder %s14, 0
    %p212 = por %p210, %p211
    %p213 = scmp.ne.s32.totalorder %s202, %s205
    %p214 = scmp.eq.s32.totalorder %s19, 3
    %p215 = por %p213, %p214
    %p216 = scmp.ne.s32.totalorder %s205, %s206
    %p217 = scmp.eq.s32.totalorder %s19, 0
    %p218 = por %p216, %p217
    %p219 = scmp.ne.s32.totalorder %s205, %s206
    %p220 = scmp.eq.s32.totalorder %s20, 3
    %p221 = por %p219, %p220
    %p223 = scmp.ne.s32.totalorder %s206, %s222
    %p224 = scmp.eq.s32.totalorder %s20, 0
    %p225 = por %p223, %p224
    %p226 = scmp.le.s32.totalorder 1, %s14
    %p227 = scmp.lt.s32.totalorder %s14, 5
    %p228 = pnand %p226, %p227
    %p229 = pneg %p228
    // Predicated region
    $region9: #{encoding_block.1} parent=5 // pred_check
      _
    $region10: #{encoding_block.1} parent=5 // pred_check_branch
      %231 = sbr.rel (%p228) target = $region12
    $region11: #{encoding_block.1} parent=5 // pred_region
      %s232 = ssub.s32 %s14, 1
      // Predicated region
      $region13: #{encoding_block.1} parent=11 // pred_check
        %p233 = pneg %p87
      $region14: #{encoding_block.1} parent=11 // pred_check_branch
        %235 = sbr.rel (%p233) target = $region16
      $region15: #{encoding_block.1} parent=11 // pred_region
        _
      $region16: #{encoding_block.1} parent=11 // pred_fallthru
        _
      // Predicated region
      $region17: #{encoding_block.1} parent=11 // pred_check
        %p236 = pneg %p108
      $region18: #{encoding_block.1} parent=11 // pred_check_branch
        %238 = sbr.rel (%p236) target = $region20
      $region19: #{encoding_block.1} parent=11 // pred_region
        _
      $region20: #{encoding_block.1} parent=11 // pred_fallthru
        _
      // Predicated region
      $region21: #{encoding_block.1} parent=11 // pred_check
        %p239 = pneg %p129
      $region22: #{encoding_block.1} parent=11 // pred_check_branch
        %241 = sbr.rel (%p239) target = $region24
      $region23: #{encoding_block.1} parent=11 // pred_region
        _
      $region24: #{encoding_block.1} parent=11 // pred_fallthru
        _
      // Predicated region
      $region25: #{encoding_block.1} parent=11 // pred_check
        %p242 = pneg %p150
      $region26: #{encoding_block.1} parent=11 // pred_check_branch
        %244 = sbr.rel (%p242) target = $region28
      $region27: #{encoding_block.1} parent=11 // pred_region
        _
      $region28: #{encoding_block.1} parent=11 // pred_fallthru
        _
      // Predicated region
      $region29: #{encoding_block.1} parent=11 // pred_check
        %p245 = pneg %p171
      $region30: #{encoding_block.1} parent=11 // pred_check_branch
        %247 = sbr.rel (%p245) target = $region32
      $region31: #{encoding_block.1} parent=11 // pred_region
        _
      $region32: #{encoding_block.1} parent=11 // pred_fallthru
        _
      // Predicated region
      $region33: #{encoding_block.1} parent=11 // pred_check
        %p248 = pneg %p192
      $region34: #{encoding_block.1} parent=11 // pred_check_branch
        %250 = sbr.rel (%p248) target = $region36
      $region35: #{encoding_block.1} parent=11 // pred_region
        _
      $region36: #{encoding_block.1} parent=11 // pred_fallthru
        _
    $region12: #{encoding_block.1} parent=5 // pred_fallthru
      _
    %p251 = scmp.lt.s32.totalorder %s14, 4
    // Predicated region
    $region37: #{encoding_block.1} parent=5 // pred_check
      %p252 = pneg %p251
    $region38: #{encoding_block.1} parent=5 // pred_check_branch
      %254 = sbr.rel (%p252) target = $region40
    $region39: #{encoding_block.1} parent=5 // pred_region
      // Predicated region
      $region41: #{encoding_block.1} parent=39 // pred_check
        %p255 = pneg %p34
      $region42: #{encoding_block.1} parent=39 // pred_check_branch
        %257 = sbr.rel (%p255) target = $region44
      $region43: #{encoding_block.1} parent=39 // pred_region
        %s258 = smul.u32 8, %s14
        %p259 = scmp.lt.s32.totalorder %s258, 31
        %s260 = scalar_select %p259, %s258, 31
        %s261 = smul.addr %s260, 8
        %s262 = scalar_lea.vmem %s0, %s261
        %s263 = smul.u32 8, %s14
      $region44: #{encoding_block.1} parent=39 // pred_fallthru
        _
      // Predicated region
      $region45: #{encoding_block.1} parent=39 // pred_check
        %p264 = pneg %p60
      $region46: #{encoding_block.1} parent=39 // pred_check_branch
        %266 = sbr.rel (%p264) target = $region48
      $region47: #{encoding_block.1} parent=39 // pred_region
        %s267 = smul.u32 8, %s14
        %p268 = scmp.lt.s32.totalorder %s267, 31
        %s269 = scalar_select %p268, %s267, 31
        %s270 = smul.addr %s269, 8
        %s271 = scalar_lea.vmem %s1, %s270
        %s272 = smul.u32 8, %s14
      $region48: #{encoding_block.1} parent=39 // pred_fallthru
        _
    $region40: #{encoding_block.1} parent=5 // pred_fallthru
      _
    %p273 = scmp.le.s32.totalorder 1, %s14
    %p274 = scmp.lt.s32.totalorder %s14, 5
    %p275 = pnand %p273, %p274
    %p276 = pneg %p275
    // Predicated region
    $region49: #{encoding_block.1} parent=5 // pred_check
      _
    $region50: #{encoding_block.1} parent=5 // pred_check_branch
      %278 = sbr.rel (%p275) target = $region52
    $region51: #{encoding_block.1} parent=5 // pred_region
      %s279 = ssub.s32 %s14, 1
      %s280 = smul.u32 8, %s19
      %p281 = scmp.lt.s32.totalorder %s280, 31
      %s282 = scalar_select %p281, %s280, 31
      %s283 = smul.addr %s282, 8
      %s284 = scalar_lea.vmem %s0, %s283
      %p285 = pneg %p40
      %p286 = pneg %p37
      %s287 = smul.u32 8, %s19
      %p288 = scmp.lt.s32.totalorder %s287, 31
      %s289 = scalar_select %p288, %s287, 31
      %s290 = smul.addr %s289, 8
      %s291 = scalar_lea.vmem %s1, %s290
      %p292 = pneg %p66
      %p293 = pneg %p63
      %p294 = pneg %p87
      %p295 = pneg %p84
      %p296 = pneg %p108
      %p297 = pneg %p105
      %p298 = pneg %p129
      %p299 = pneg %p126
      %p300 = pneg %p150
      %p301 = pneg %p147
      %p302 = pneg %p171
      %p303 = pneg %p168
      %p304 = pneg %p192
      %p305 = pneg %p189
      %p306 = pneg %p218
      %p307 = pneg %p215
      %s308 = smul.u32 8, %s19
      %p309 = scmp.lt.s32.totalorder %s308, 31
      %s310 = scalar_select %p309, %s308, 31
      %s311 = smul.addr %s310, 8
      %s312 = scalar_lea.vmem %s8, %s311
      %s313 = smul.u32 8, %s19
      %p314 = scmp.lt.s32.totalorder %s313, 31
      %s315 = scalar_select %p314, %s313, 31
      %s316 = smul.addr %s315, 8
      %s317 = scalar_lea.vmem %s0, %s316
      %s318 = smul.u32 8, %s19
      %s319 = smul.u32 8, %s19
      %p320 = scmp.lt.s32.totalorder %s319, 31
      %s321 = scalar_select %p320, %s319, 31
      %s322 = smul.addr %s321, 8
      %s323 = scalar_lea.vmem %s1, %s322
      %s324 = smul.u32 8, %s19
      %s325 = smul.u32 8, %s19
      %p326 = scmp.lt.s32.totalorder %s325, 31
      %s327 = scalar_select %p326, %s325, 31
      %s328 = smul.addr %s327, 8
      %s329 = scalar_lea.vmem %s8, %s328
      %s330 = smul.u32 8, %s19
      %v331 = vld [vmem:[%s317] sm:$0xff]
      %v332 = vld [vmem:[%s317 + $0x8] sm:$0xff]
      %v333 = vld [vmem:[%s317 + $0x10] sm:$0xff]
      %v334 = vld [vmem:[%s317 + $0x18] sm:$0xff]
      %v335 = vld [vmem:[%s317 + $0x20] sm:$0xff]
      %v336 = vld [vmem:[%s317 + $0x28] sm:$0xff]
      %v337 = vld [vmem:[%s317 + $0x30] sm:$0xff]
      %v338 = vld [vmem:[%s317 + $0x38] sm:$0xff]
      %v339 = vld [vmem:[%s2] sm:$0xff]
      %v340 = vld [vmem:[%s2 + $0x8] sm:$0xff]
      %v341 = vld [vmem:[%s2 + $0x10] sm:$0xff]
      %v342 = vld [vmem:[%s2 + $0x18] sm:$0xff]
      %v343 = vld [vmem:[%s2 + $0x20] sm:$0xff]
      %v344 = vld [vmem:[%s2 + $0x28] sm:$0xff]
      %v345 = vld [vmem:[%s2 + $0x30] sm:$0xff]
      %v346 = vld [vmem:[%s2 + $0x38] sm:$0xff]
      %v347 = vld [vmem:[%s2 + $0x40] sm:$0xff]
      %v348 = vld [vmem:[%s2 + $0x48] sm:$0xff]
      %v349 = vld [vmem:[%s2 + $0x50] sm:$0xff]
      %v350 = vld [vmem:[%s2 + $0x58] sm:$0xff]
      %v351 = vld [vmem:[%s2 + $0x60] sm:$0xff]
      %v352 = vld [vmem:[%s2 + $0x68] sm:$0xff]
      %v353 = vld [vmem:[%s2 + $0x70] sm:$0xff]
      %v354 = vld [vmem:[%s2 + $0x78] sm:$0xff]
      %v355 = vld [vmem:[%s3] sm:$0x1]
      %v357 = vperm.slane %v355, 0
      %359 = vmatpush.msra.mxu0 %v354
      %360 = vmatpush.msra.mxu0 %v353
      %361 = vmatpush.msra.mxu0 %v352
      %362 = vmatpush.msra.mxu0 %v351
      %363 = vmatpush.msra.mxu0 %v350
      %364 = vmatpush.msra.mxu0 %v349
      %365 = vmatpush.msra.mxu0 %v348
      %366 = vmatpush.msra.mxu0 %v347
      %367 = vmatpush.msra.mxu0 %v346
      %368 = vmatpush.msra.mxu0 %v345
      %369 = vmatpush.msra.mxu0 %v344
      %370 = vmatpush.msra.mxu0 %v343
      %371 = vmatpush.msra.mxu0 %v342
      %372 = vmatpush.msra.mxu0 %v341
      %373 = vmatpush.msra.mxu0 %v340
      %374 = vmatpush.msra.mxu0 %v339
      %375 = vmatmul.f32.gmra.mxu0 %v331
      %v376 = vpop.f32.mrf.mxu0
      %v377 = vadd.f32 %v357, %v376
      %378 = vmatmul.f32.gmra.mxu0 %v332
      %v379 = vpop.f32.mrf.mxu0
      %v380 = vadd.f32 %v357, %v379
      %381 = vmatmul.f32.gmra.mxu0 %v333
      %v382 = vpop.f32.mrf.mxu0
      %v383 = vadd.f32 %v357, %v382
      %384 = vmatmul.f32.gmra.mxu0 %v334
      %v385 = vpop.f32.mrf.mxu0
      %v386 = vadd.f32 %v357, %v385
      %387 = vmatmul.f32.gmra.mxu0 %v335
      %v388 = vpop.f32.mrf.mxu0
      %v389 = vadd.f32 %v357, %v388
      %390 = vmatmul.f32.gmra.mxu0 %v336
      %v391 = vpop.f32.mrf.mxu0
      %v392 = vadd.f32 %v357, %v391
      %393 = vmatmul.f32.gmra.mxu0 %v337
      %v394 = vpop.f32.mrf.mxu0
      %v395 = vadd.f32 %v357, %v394
      %396 = vmatmul.f32.gmra.mxu0 %v338
      %v397 = vpop.f32.mrf.mxu0
      %v398 = vadd.f32 %v357, %v397
      %399 = vdwg.mxu0
      %v400 = vmax.f32 %v377, 0.0
      %v401 = vmax.f32 %v380, 0.0
      %v402 = vmax.f32 %v383, 0.0
      %v403 = vmax.f32 %v386, 0.0
      %v404 = vmax.f32 %v389, 0.0
      %v405 = vmax.f32 %v392, 0.0
      %v406 = vmax.f32 %v395, 0.0
      %v407 = vmax.f32 %v398, 0.0
      %v408 = vld [vmem:[%s323] sm:$0xff]
      %v409 = vld [vmem:[%s323 + $0x8] sm:$0xff]
      %v410 = vld [vmem:[%s323 + $0x10] sm:$0xff]
      %v411 = vld [vmem:[%s323 + $0x18] sm:$0xff]
      %v412 = vld [vmem:[%s323 + $0x20] sm:$0xff]
      %v413 = vld [vmem:[%s323 + $0x28] sm:$0xff]
      %v414 = vld [vmem:[%s323 + $0x30] sm:$0xff]
      %v415 = vld [vmem:[%s323 + $0x38] sm:$0xff]
      %v416 = vld [vmem:[%s4] sm:$0xff]
      %v417 = vld [vmem:[%s4 + $0x8] sm:$0xff]
      %v418 = vld [vmem:[%s4 + $0x10] sm:$0xff]
      %v419 = vld [vmem:[%s4 + $0x18] sm:$0xff]
      %v420 = vld [vmem:[%s4 + $0x20] sm:$0xff]
      %v421 = vld [vmem:[%s4 + $0x28] sm:$0xff]
      %v422 = vld [vmem:[%s4 + $0x30] sm:$0xff]
      %v423 = vld [vmem:[%s4 + $0x38] sm:$0xff]
      %v424 = vld [vmem:[%s4 + $0x40] sm:$0xff]
      %v425 = vld [vmem:[%s4 + $0x48] sm:$0xff]
      %v426 = vld [vmem:[%s4 + $0x50] sm:$0xff]
      %v427 = vld [vmem:[%s4 + $0x58] sm:$0xff]
      %v428 = vld [vmem:[%s4 + $0x60] sm:$0xff]
      %v429 = vld [vmem:[%s4 + $0x68] sm:$0xff]
      %v430 = vld [vmem:[%s4 + $0x70] sm:$0xff]
      %v431 = vld [vmem:[%s4 + $0x78] sm:$0xff]
      %v432 = vld [vmem:[%s5] sm:$0x1]
      %v434 = vperm.slane %v432, 0
      %436 = vmatpush.msra.mxu0 %v431
      %437 = vmatpush.msra.mxu0 %v430
      %438 = vmatpush.msra.mxu0 %v429
      %439 = vmatpush.msra.mxu0 %v428
      %440 = vmatpush.msra.mxu0 %v427
      %441 = vmatpush.msra.mxu0 %v426
      %442 = vmatpush.msra.mxu0 %v425
      %443 = vmatpush.msra.mxu0 %v424
      %444 = vmatpush.msra.mxu0 %v423
      %445 = vmatpush.msra.mxu0 %v422
      %446 = vmatpush.msra.mxu0 %v421
      %447 = vmatpush.msra.mxu0 %v420
      %448 = vmatpush.msra.mxu0 %v419
      %449 = vmatpush.msra.mxu0 %v418
      %450 = vmatpush.msra.mxu0 %v417
      %451 = vmatpush.msra.mxu0 %v416
      %452 = vmatmul.f32.gmra.mxu0 %v408
      %v453 = vpop.f32.mrf.mxu0
      %v454 = vadd.f32 %v434, %v453
      %455 = vmatmul.f32.gmra.mxu0 %v409
      %v456 = vpop.f32.mrf.mxu0
      %v457 = vadd.f32 %v434, %v456
      %458 = vmatmul.f32.gmra.mxu0 %v410
      %v459 = vpop.f32.mrf.mxu0
      %v460 = vadd.f32 %v434, %v459
      %461 = vmatmul.f32.gmra.mxu0 %v411
      %v462 = vpop.f32.mrf.mxu0
      %v463 = vadd.f32 %v434, %v462
      %464 = vmatmul.f32.gmra.mxu0 %v412
      %v465 = vpop.f32.mrf.mxu0
      %v466 = vadd.f32 %v434, %v465
      %467 = vmatmul.f32.gmra.mxu0 %v413
      %v468 = vpop.f32.mrf.mxu0
      %v469 = vadd.f32 %v434, %v468
      %470 = vmatmul.f32.gmra.mxu0 %v414
      %v471 = vpop.f32.mrf.mxu0
      %v472 = vadd.f32 %v434, %v471
      %473 = vmatmul.f32.gmra.mxu0 %v415
      %v474 = vpop.f32.mrf.mxu0
      %v475 = vadd.f32 %v434, %v474
      %476 = vdwg.mxu0
      %v477 = vmax.f32 %v454, 0.0
      %v478 = vmax.f32 %v457, 0.0
      %v479 = vmax.f32 %v460, 0.0
      %v480 = vmax.f32 %v463, 0.0
      %v481 = vmax.f32 %v466, 0.0
      %v482 = vmax.f32 %v469, 0.0
      %v483 = vmax.f32 %v472, 0.0
      %v484 = vmax.f32 %v475, 0.0
      %v485 = vadd.f32 %v400, %v477
      %v486 = vadd.f32 %v401, %v478
      %v487 = vadd.f32 %v402, %v479
      %v488 = vadd.f32 %v403, %v480
      %v489 = vadd.f32 %v404, %v481
      %v490 = vadd.f32 %v405, %v482
      %v491 = vadd.f32 %v406, %v483
      %v492 = vadd.f32 %v407, %v484
      %v493 = vld [vmem:[%s6] sm:$0xff]
      %v494 = vld [vmem:[%s6 + $0x8] sm:$0xff]
      %v495 = vld [vmem:[%s6 + $0x10] sm:$0xff]
      %v496 = vld [vmem:[%s6 + $0x18] sm:$0xff]
      %v497 = vld [vmem:[%s6 + $0x20] sm:$0xff]
      %v498 = vld [vmem:[%s6 + $0x28] sm:$0xff]
      %v499 = vld [vmem:[%s6 + $0x30] sm:$0xff]
      %v500 = vld [vmem:[%s6 + $0x38] sm:$0xff]
      %v501 = vld [vmem:[%s6 + $0x40] sm:$0xff]
      %v502 = vld [vmem:[%s6 + $0x48] sm:$0xff]
      %v503 = vld [vmem:[%s6 + $0x50] sm:$0xff]
      %v504 = vld [vmem:[%s6 + $0x58] sm:$0xff]
      %v505 = vld [vmem:[%s6 + $0x60] sm:$0xff]
      %v506 = vld [vmem:[%s6 + $0x68] sm:$0xff]
      %v507 = vld [vmem:[%s6 + $0x70] sm:$0xff]
      %v508 = vld [vmem:[%s6 + $0x78] sm:$0xff]
      %v509 = vld [vmem:[%s7] sm:$0x1]
      %v511 = vperm.slane %v509, 0
      %513 = vmatpush.msra.mxu0 %v508
      %514 = vmatpush.msra.mxu0 %v507
      %515 = vmatpush.msra.mxu0 %v506
      %516 = vmatpush.msra.mxu0 %v505
      %517 = vmatpush.msra.mxu0 %v504
      %518 = vmatpush.msra.mxu0 %v503
      %519 = vmatpush.msra.mxu0 %v502
      %520 = vmatpush.msra.mxu0 %v501
      %521 = vmatpush.msra.mxu0 %v500
      %522 = vmatpush.msra.mxu0 %v499
      %523 = vmatpush.msra.mxu0 %v498
      %524 = vmatpush.msra.mxu0 %v497
      %525 = vmatpush.msra.mxu0 %v496
      %526 = vmatpush.msra.mxu0 %v495
      %527 = vmatpush.msra.mxu0 %v494
      %528 = vmatpush.msra.mxu0 %v493
      %529 = vmatmul.f32.gmra.mxu0 %v485
      %v530 = vpop.f32.mrf.mxu0
      %v531 = vadd.f32 %v511, %v530
      %532 = vmatmul.f32.gmra.mxu0 %v486
      %v533 = vpop.f32.mrf.mxu0
      %v534 = vadd.f32 %v511, %v533
      %535 = vmatmul.f32.gmra.mxu0 %v487
      %v536 = vpop.f32.mrf.mxu0
      %v537 = vadd.f32 %v511, %v536
      %538 = vmatmul.f32.gmra.mxu0 %v488
      %v539 = vpop.f32.mrf.mxu0
      %v540 = vadd.f32 %v511, %v539
      %541 = vmatmul.f32.gmra.mxu0 %v489
      %v542 = vpop.f32.mrf.mxu0
      %v543 = vadd.f32 %v511, %v542
      %544 = vmatmul.f32.gmra.mxu0 %v490
      %v545 = vpop.f32.mrf.mxu0
      %v546 = vadd.f32 %v511, %v545
      %547 = vmatmul.f32.gmra.mxu0 %v491
      %v548 = vpop.f32.mrf.mxu0
      %v549 = vadd.f32 %v511, %v548
      %550 = vmatmul.f32.gmra.mxu0 %v492
      %v551 = vpop.f32.mrf.mxu0
      %v552 = vadd.f32 %v511, %v551
      %553 = vdwg.mxu0
      %v554 = vmax.f32 %v531, 0.0
      %v555 = vmax.f32 %v534, 0.0
      %v556 = vmax.f32 %v537, 0.0
      %v557 = vmax.f32 %v540, 0.0
      %v558 = vmax.f32 %v543, 0.0
      %v559 = vmax.f32 %v546, 0.0
      %v560 = vmax.f32 %v549, 0.0
      %v561 = vmax.f32 %v552, 0.0
      %562 = vst [vmem:[%s329] sm:$0xff] %v554
      %563 = vst [vmem:[%s329 + $0x8] sm:$0xff] %v555
      %564 = vst [vmem:[%s329 + $0x10] sm:$0xff] %v556
      %565 = vst [vmem:[%s329 + $0x18] sm:$0xff] %v557
      %566 = vst [vmem:[%s329 + $0x20] sm:$0xff] %v558
      %567 = vst [vmem:[%s329 + $0x28] sm:$0xff] %v559
      %568 = vst [vmem:[%s329 + $0x30] sm:$0xff] %v560
      %569 = vst [vmem:[%s329 + $0x38] sm:$0xff] %v561
      %s570 = smul.u32 8, %s19
      %p571 = scmp.lt.s32.totalorder %s570, 31
      %s572 = scalar_select %p571, %s570, 31
      %s573 = smul.addr %s572, 8
      %s574 = scalar_lea.vmem %s8, %s573
      // Predicated region
      $region53: #{encoding_block.1} parent=51 // pred_check
        %p575 = pneg %p215
      $region54: #{encoding_block.1} parent=51 // pred_check_branch
        %577 = sbr.rel (%p575) target = $region56
      $region55: #{encoding_block.1} parent=51 // pred_region
        %s578 = smul.u32 8, %s19
      $region56: #{encoding_block.1} parent=51 // pred_fallthru
        _
    $region52: #{encoding_block.1} parent=5 // pred_fallthru
      _
    %p579 = scmp.le.s32.totalorder 2, %s14
    // Predicated region
    $region57: #{encoding_block.1} parent=5 // pred_check
      %p580 = pneg %p579
    $region58: #{encoding_block.1} parent=5 // pred_check_branch
      %582 = sbr.rel (%p580) target = $region60
    $region59: #{encoding_block.1} parent=5 // pred_region
      %s583 = ssub.s32 %s14, 2
      // Predicated region
      $region61: #{encoding_block.1} parent=59 // pred_check
        %p584 = pneg %p221
      $region62: #{encoding_block.1} parent=59 // pred_check_branch
        %586 = sbr.rel (%p584) target = $region64
      $region63: #{encoding_block.1} parent=59 // pred_region
        %s587 = smul.u32 8, %s20
        %p588 = scmp.lt.s32.totalorder %s587, 31
        %s589 = scalar_select %p588, %s587, 31
        %s590 = smul.addr %s589, 8
        %s591 = scalar_lea.vmem %s8, %s590
      $region64: #{encoding_block.1} parent=59 // pred_fallthru
        _
    $region60: #{encoding_block.1} parent=5 // pred_fallthru
      _
  $region6: #{encoding_block.1} parent=0 // loop_footer
    %s18 = sadd.s32 1, %s14
  $region7: #{encoding_block.1} parent=0 // loop_footer_branch
    %13 = sbr.rel target = $region3
  $region8: #{encoding_block.1} parent=0 // loop_exit
    _

</llo_original>
